<compile_context>
chip_gen: v7x
topology: tpu7x:2x2x1
jax: 0.10.0
libtpu: 0.0.40
codegen_flags: <defaults>
</compile_context>

<pallas_src>
import functools

import jax
import jax.numpy as jnp
from jax.experimental import pallas as pl
from jax.experimental.pallas import tpu as pltpu

NEG_SLOPE = 0.01   # PyTorch nn.LeakyReLU default
BN_EPS = 1e-5


# ------------------------------ Pallas kernel -------------------------------

def _fused_kernel(x_ref, w1_ref, b1_ref, w2_ref, b2_ref, d_ref, o_ref,
                  pad_ref, slab_ref, *, H, W, cpad, off):
    """One image per grid step, channels-first, flat spatial on lanes.

    x_ref:    (1, Cin, H*W)        input image, row-major flattened spatial
    w1_ref:   (Cin,  9*cpad)       conv1 weights (BN1 scale folded in)
    b1_ref:   (Cin,  1)            folded conv1+BN1 bias
    w2_ref:   (Cout, 9*cpad)       conv2 weights (BN2 scale folded in)
    b2_ref:   (Cout, 1)            folded conv2+BN2 bias
    d_ref:    (1, 1, H*W)          depth map
    o_ref:    (1, Cout, H*W)       output
    pad_ref:  (Cin, 2*off + H*W)   VMEM halo scratch (flat spatial + zero pads)
    slab_ref: (9*cpad, H*W)        VMEM im2col slab scratch
    """
    HW = H * W
    C = x_ref.shape[1]

    # Zero the halo and the channel-padding rows once per grid step
    # (scratch persists across grid iterations, so do it every step).
    pad_ref[...] = jnp.zeros_like(pad_ref)
    slab_ref[...] = jnp.zeros_like(slab_ref)

    # Column index of every flat spatial position; used to zero the taps that
    # would otherwise read across a row boundary in the flat layout.
    col = jax.lax.broadcasted_iota(jnp.int32, (1, HW), 1) % W
    not_first_col = col >= 1        # valid positions for taps reading (w - 1)
    not_last_col = col <= W - 2     # valid positions for taps reading (w + 1)

    def build_slab(z):
        # z: (C, HW) row-major flattened spatial map (channels-first).
        # Vertical (H) borders are handled by the zero halo in pad_ref,
        # horizontal (W) borders by the column masks.
        pad_ref[:, off:off + HW] = z
        tap = 0
        for oh in (-1, 0, 1):
            for ow in (-1, 0, 1):
                s = oh * W + ow
                t = pad_ref[:, off + s:off + s + HW]
                if ow == -1:
                    t = jnp.where(not_first_col, t, 0.0)
                elif ow == 1:
                    t = jnp.where(not_last_col, t, 0.0)
                slab_ref[tap * cpad:tap * cpad + C, :] = t
                tap += 1

    # conv1 (+ folded BN1) + LeakyReLU  -- single MXU matmul
    build_slab(x_ref[0])
    h = jnp.dot(w1_ref[...], slab_ref[...],
                preferred_element_type=jnp.float32) + b1_ref[...]
    h = jnp.where(h >= 0, h, NEG_SLOPE * h)

    # conv2 (+ folded BN2) + LeakyReLU, then depth multiply
    build_slab(h)
    y = jnp.dot(w2_ref[...], slab_ref[...],
                preferred_element_type=jnp.float32) + b2_ref[...]
    y = jnp.where(y >= 0, y, NEG_SLOPE * y)
    y = y * d_ref[0]                           # (Cout, HW) * (1, HW)
    o_ref[0] = y.astype(o_ref.dtype)


# --------------------------- host-side preparation --------------------------

def _fold_bn(conv_bias, gamma, beta, mean, var):
    # Eval-mode BatchNorm folded to per-channel scale/bias (conv bias folded
    # in too).  scale is later folded into the conv weight matrix.
    scale = gamma / jnp.sqrt(var + BN_EPS)
    bias = (conv_bias - mean) * scale + beta
    return scale, bias


def _pack_weight(w_oihw, scale, cpad):
    """PyTorch OIHW (Cout, Cin, 3, 3) -> (Cout, 9*cpad) with BN scale folded.

    Column layout: ((kh*3 + kw) * cpad + cin), matching the slab row layout
    built by the kernel (tap-major, channel-minor, channels zero-padded to
    cpad)."""
    cout, cin, kh, kw = w_oihw.shape
    w = jnp.transpose(w_oihw, (0, 2, 3, 1))          # (Cout, 3, 3, Cin)
    w = w * scale[:, None, None, None]               # fold BN scale
    if cpad > cin:
        w = jnp.pad(w, ((0, 0), (0, 0), (0, 0), (0, cpad - cin)))
    return w.reshape(cout, kh * kw * cpad).astype(jnp.float32)


def depth_map_cnn_forward(x_nchw, x_depth_nchw, params):
    """x: (N, num_in_ch, H, W); x_depth: (N, 1, H, W); returns NCHW output."""
    N, Cin, H, W = x_nchw.shape
    Cout = params["w2"].shape[0]
    HW = H * W
    cpad = ((Cin + 7) // 8) * 8                      # pad channels to sublanes
    off = ((W + 1 + 127) // 128) * 128               # lane-aligned halo offset
    pad_len = 2 * off + HW

    s1, b1 = _fold_bn(params["b1"], params["g1"], params["beta1"],
                      params["m1"], params["v1"])
    s2, b2 = _fold_bn(params["b2"], params["g2"], params["beta2"],
                      params["m2"], params["v2"])

    w1 = _pack_weight(params["w1"], s1, cpad)        # (Cin,  9*cpad)
    w2 = _pack_weight(params["w2"], s2, cpad)        # (Cout, 9*cpad)

    x_flat = x_nchw.reshape(N, Cin, HW)              # free reshapes, no transpose
    d_flat = x_depth_nchw.reshape(N, 1, HW)

    kern = functools.partial(_fused_kernel, H=H, W=W, cpad=cpad, off=off)

    out_flat = pl.pallas_call(
        kern,
        out_shape=jax.ShapeDtypeStruct((N, Cout, HW), jnp.float32),
        grid=(N,),
        in_specs=[
            pl.BlockSpec((1, Cin, HW), lambda b: (b, 0, 0)),       # x
            pl.BlockSpec((Cin, 9 * cpad), lambda b: (0, 0)),       # w1
            pl.BlockSpec((Cin, 1), lambda b: (0, 0)),              # bias1
            pl.BlockSpec((Cout, 9 * cpad), lambda b: (0, 0)),      # w2
            pl.BlockSpec((Cout, 1), lambda b: (0, 0)),             # bias2
            pl.BlockSpec((1, 1, HW), lambda b: (b, 0, 0)),         # depth
        ],
        out_specs=pl.BlockSpec((1, Cout, HW), lambda b: (b, 0, 0)),
        scratch_shapes=[
            pltpu.VMEM((Cin, pad_len), jnp.float32),               # halo buffer
            pltpu.VMEM((9 * cpad, HW), jnp.float32),               # im2col slab
        ],
        compiler_params=pltpu.CompilerParams(
            dimension_semantics=("parallel",)),
    )(x_flat, w1, b1.reshape(Cin, 1), w2, b2.reshape(Cout, 1), d_flat)

    return out_flat.reshape(N, Cout, H, W)


# ------------------------------ pure-JAX ref ---------------------------------

def _reference(x, x_depth, params):
    def conv(z, w, b):
        y = jax.lax.conv_general_dilated(
            z, w, window_strides=(1, 1), padding=((1, 1), (1, 1)),
            dimension_numbers=("NCHW", "OIHW", "NCHW"),
            precision=jax.lax.Precision.HIGHEST)
        return y + b[None, :, None, None]

    def bn(y, g, beta, m, v):
        return (g[None, :, None, None] * (y - m[None, :, None, None])
                / jnp.sqrt(v[None, :, None, None] + BN_EPS)
                + beta[None, :, None, None])

    def lrelu(y):
        return jnp.where(y >= 0, y, NEG_SLOPE * y)

    h = lrelu(bn(conv(x, params["w1"], params["b1"]),
                 params["g1"], params["beta1"], params["m1"], params["v1"]))
    o = lrelu(bn(conv(h, params["w2"], params["b2"]),
                 params["g2"], params["beta2"], params["m2"], params["v2"]))
    return o * x_depth


# ---------------------------------- main -------------------------------------

def _init_params(key, num_in_ch, embed_dim):
    ks = jax.random.split(key, 12)
    # Conv weights in PyTorch OIHW layout (converted inside the wrapper).
    return {
        "w1": 0.1 * jax.random.normal(ks[0], (num_in_ch, num_in_ch, 3, 3),
                                      jnp.float32),
        "b1": 0.1 * jax.random.normal(ks[1], (num_in_ch,), jnp.float32),
        "g1": 1.0 + 0.1 * jax.random.normal(ks[2], (num_in_ch,), jnp.float32),
        "beta1": 0.1 * jax.random.normal(ks[3], (num_in_ch,), jnp.float32),
        "m1": 0.1 * jax.random.normal(ks[4], (num_in_ch,), jnp.float32),
        "v1": 1.0 + 0.1 * jnp.abs(jax.random.normal(ks[5], (num_in_ch,),
                                                    jnp.float32)),
        "w2": 0.1 * jax.random.normal(ks[6], (embed_dim, num_in_ch, 3, 3),
                                      jnp.float32),
        "b2": 0.1 * jax.random.normal(ks[7], (embed_dim,), jnp.float32),
        "g2": 1.0 + 0.1 * jax.random.normal(ks[8], (embed_dim,), jnp.float32),
        "beta2": 0.1 * jax.random.normal(ks[9], (embed_dim,), jnp.float32),
        "m2": 0.1 * jax.random.normal(ks[10], (embed_dim,), jnp.float32),
        "v2": 1.0 + 0.1 * jnp.abs(jax.random.normal(ks[11], (embed_dim,),
                                                    jnp.float32)),
    }


if __name__ == "__main__":
    N, num_in_ch, embed_dim, H, W = 2, 4, 32, 16, 16

    key = jax.random.PRNGKey(0)
    kx, kd, kp = jax.random.split(key, 3)
    x = jax.random.normal(kx, (N, num_in_ch, H, W), jnp.float32)
    x_depth = jax.random.uniform(kd, (N, 1, H, W), jnp.float32)
    params = _init_params(kp, num_in_ch, embed_dim)

    fwd = jax.jit(depth_map_cnn_forward)
    out = jax.block_until_ready(fwd(x, x_depth, params))
    ref = jax.block_until_ready(_reference(x, x_depth, params))

    assert out.shape == (N, embed_dim, H, W), out.shape
    assert jnp.allclose(out, ref, atol=1e-4, rtol=1e-4), \
        float(jnp.max(jnp.abs(out - ref)))
    print("KERNEL_OK")
</pallas_src>

<mosaic_0001>
module attributes {stable_mosaic.version = 11 : i64} {
  func.func @_fused_kernel(%arg0: i32, %arg1: memref<1x4x256xf32, #tpu.memory_space<vmem>>, %arg2: memref<4x72xf32, #tpu.memory_space<vmem>>, %arg3: memref<4x1xf32, #tpu.memory_space<vmem>>, %arg4: memref<32x72xf32, #tpu.memory_space<vmem>>, %arg5: memref<32x1xf32, #tpu.memory_space<vmem>>, %arg6: memref<1x1x256xf32, #tpu.memory_space<vmem>>, %arg7: memref<1x32x256xf32, #tpu.memory_space<vmem>>, %arg8: memref<4x512xf32, #tpu.memory_space<vmem>>, %arg9: memref<72x256xf32, #tpu.memory_space<vmem>>) attributes {dimension_semantics = [#tpu.dimension_semantics<parallel>], iteration_bounds = array<i64: 2>, scalar_prefetch = 0 : i64, scratch_operands = 2 : i64, tpu.core_type = #tpu.core_type<tc>, window_params = [{transform_indices = @transform_0, window_bounds = array<i64: 1, 4, 256>}, {pipeline_mode = #tpu.pipeline_mode<synchronous>, transform_indices = @transform_1, window_bounds = array<i64: 4, 72>}, {pipeline_mode = #tpu.pipeline_mode<synchronous>, transform_indices = @transform_2, window_bounds = array<i64: 4, 1>}, {pipeline_mode = #tpu.pipeline_mode<synchronous>, transform_indices = @transform_3, window_bounds = array<i64: 32, 72>}, {pipeline_mode = #tpu.pipeline_mode<synchronous>, transform_indices = @transform_4, window_bounds = array<i64: 32, 1>}, {transform_indices = @transform_5, window_bounds = array<i64: 1, 1, 256>}, {transform_indices = @transform_6, window_bounds = array<i64: 1, 32, 256>}]} {
    %cst = arith.constant 0.000000e+00 : f32
    %0 = vector.broadcast %cst : f32 to vector<4x512xf32>
    %c0 = arith.constant 0 : index
    %c0_0 = arith.constant 0 : index
    %1 = vector.load %arg8[%c0, %c0_0] : memref<4x512xf32, #tpu.memory_space<vmem>>, vector<4x512xf32>
    tpu.vector_store %arg8[%c0, %c0_0], %0 {strides = array<i32>} : memref<4x512xf32, #tpu.memory_space<vmem>>, vector<4x512xf32>,
    %cst_1 = arith.constant 0.000000e+00 : f32
    %2 = vector.broadcast %cst_1 : f32 to vector<72x256xf32>
    %c0_2 = arith.constant 0 : index
    %c0_3 = arith.constant 0 : index
    %3 = vector.load %arg9[%c0_2, %c0_3] : memref<72x256xf32, #tpu.memory_space<vmem>>, vector<72x256xf32>
    tpu.vector_store %arg9[%c0_2, %c0_3], %2 {strides = array<i32>} : memref<72x256xf32, #tpu.memory_space<vmem>>, vector<72x256xf32>,
    %4 = tpu.iota {dimensions = array<i32: 1>} : vector<1x256xi32>
    %c16_i32 = arith.constant 16 : i32
    %c0_i32 = arith.constant 0 : i32
    %5 = arith.cmpi eq, %c16_i32, %c0_i32 : i32
    %c1_i32 = arith.constant 1 : i32
    %6 = arith.select %5, %c1_i32, %c16_i32 : i32
    %7 = vector.broadcast %6 : i32 to vector<1x256xi32>
    %8 = arith.remsi %4, %7 : vector<1x256xi32>
    %c0_i32_4 = arith.constant 0 : i32
    %9 = vector.broadcast %c0_i32_4 : i32 to vector<1x256xi32>
    %10 = arith.cmpi ne, %8, %9 : vector<1x256xi32>
    %c0_i32_5 = arith.constant 0 : i32
    %11 = vector.broadcast %c0_i32_5 : i32 to vector<1x256xi32>
    %12 = arith.cmpi slt, %8, %11 : vector<1x256xi32>
    %c0_i32_6 = arith.constant 0 : i32
    %13 = arith.cmpi slt, %6, %c0_i32_6 : i32
    %14 = vector.broadcast %13 : i1 to vector<1x256xi1>
    %15 = vector.broadcast %14 : vector<1x256xi1> to vector<1x256xi1>
    %16 = arith.xori %12, %15 : vector<1x256xi1>
    %17 = arith.andi %16, %10 : vector<1x256xi1>
    %18 = vector.broadcast %6 : i32 to vector<1x256xi32>
    %19 = arith.addi %8, %18 : vector<1x256xi32>
    %20 = arith.select %17, %19, %8 : vector<1x256xi1>, vector<1x256xi32>
    %c1_i32_7 = arith.constant 1 : i32
    %21 = vector.broadcast %c1_i32_7 : i32 to vector<1x256xi32>
    %22 = arith.cmpi sge, %20, %21 : vector<1x256xi32>
    %c14_i32 = arith.constant 14 : i32
    %23 = vector.broadcast %c14_i32 : i32 to vector<1x256xi32>
    %24 = arith.cmpi sle, %20, %23 : vector<1x256xi32>
    %c0_8 = arith.constant 0 : index
    %c0_9 = arith.constant 0 : index
    %c0_10 = arith.constant 0 : index
    %25 = vector.load %arg1[%c0_8, %c0_9, %c0_10] : memref<1x4x256xf32, #tpu.memory_space<vmem>>, vector<1x4x256xf32>
    %26 = vector.shape_cast %25 : vector<1x4x256xf32> to vector<4x256xf32>
    %c0_11 = arith.constant 0 : index
    %c128 = arith.constant 128 : index
    %27 = vector.load %arg8[%c0_11, %c128] : memref<4x512xf32, #tpu.memory_space<vmem>>, vector<4x256xf32>
    tpu.vector_store %arg8[%c0_11, %c128], %26 {strides = array<i32>} : memref<4x512xf32, #tpu.memory_space<vmem>>, vector<4x256xf32>,
    %c0_12 = arith.constant 0 : index
    %c111 = arith.constant 111 : index
    %28 = vector.load %arg8[%c0_12, %c111] : memref<4x512xf32, #tpu.memory_space<vmem>>, vector<4x256xf32>
    %cst_13 = arith.constant 0.000000e+00 : f32
    %29 = vector.shape_cast %22 : vector<1x256xi1> to vector<1x256xi1>
    %30 = vector.broadcast %29 : vector<1x256xi1> to vector<4x256xi1>
    %31 = vector.broadcast %cst_13 : f32 to vector<4x256xf32>
    %32 = arith.select %30, %28, %31 : vector<4x256xi1>, vector<4x256xf32>
    %c0_14 = arith.constant 0 : index
    %c0_15 = arith.constant 0 : index
    %33 = vector.load %arg9[%c0_14, %c0_15] : memref<72x256xf32, #tpu.memory_space<vmem>>, vector<4x256xf32>
    tpu.vector_store %arg9[%c0_14, %c0_15], %32 {strides = array<i32>} : memref<72x256xf32, #tpu.memory_space<vmem>>, vector<4x256xf32>,
    %c0_16 = arith.constant 0 : index
    %c112 = arith.constant 112 : index
    %34 = vector.load %arg8[%c0_16, %c112] : memref<4x512xf32, #tpu.memory_space<vmem>>, vector<4x256xf32>
    %c8 = arith.constant 8 : index
    %c0_17 = arith.constant 0 : index
    %35 = vector.load %arg9[%c8, %c0_17] : memref<72x256xf32, #tpu.memory_space<vmem>>, vector<4x256xf32>
    tpu.vector_store %arg9[%c8, %c0_17], %34 {strides = array<i32>} : memref<72x256xf32, #tpu.memory_space<vmem>>, vector<4x256xf32>,
    %c0_18 = arith.constant 0 : index
    %c113 = arith.constant 113 : index
    %36 = vector.load %arg8[%c0_18, %c113] : memref<4x512xf32, #tpu.memory_space<vmem>>, vector<4x256xf32>
    %cst_19 = arith.constant 0.000000e+00 : f32
    %37 = vector.shape_cast %24 : vector<1x256xi1> to vector<1x256xi1>
    %38 = vector.broadcast %37 : vector<1x256xi1> to vector<4x256xi1>
    %39 = vector.broadcast %cst_19 : f32 to vector<4x256xf32>
    %40 = arith.select %38, %36, %39 : vector<4x256xi1>, vector<4x256xf32>
    %c16 = arith.constant 16 : index
    %c0_20 = arith.constant 0 : index
    %41 = vector.load %arg9[%c16, %c0_20] : memref<72x256xf32, #tpu.memory_space<vmem>>, vector<4x256xf32>
    tpu.vector_store %arg9[%c16, %c0_20], %40 {strides = array<i32>} : memref<72x256xf32, #tpu.memory_space<vmem>>, vector<4x256xf32>,
    %c0_21 = arith.constant 0 : index
    %c127 = arith.constant 127 : index
    %42 = vector.load %arg8[%c0_21, %c127] : memref<4x512xf32, #tpu.memory_space<vmem>>, vector<4x256xf32>
    %cst_22 = arith.constant 0.000000e+00 : f32
    %43 = vector.shape_cast %22 : vector<1x256xi1> to vector<1x256xi1>
    %44 = vector.broadcast %43 : vector<1x256xi1> to vector<4x256xi1>
    %45 = vector.broadcast %cst_22 : f32 to vector<4x256xf32>
    %46 = arith.select %44, %42, %45 : vector<4x256xi1>, vector<4x256xf32>
    %c24 = arith.constant 24 : index
    %c0_23 = arith.constant 0 : index
    %47 = vector.load %arg9[%c24, %c0_23] : memref<72x256xf32, #tpu.memory_space<vmem>>, vector<4x256xf32>
    tpu.vector_store %arg9[%c24, %c0_23], %46 {strides = array<i32>} : memref<72x256xf32, #tpu.memory_space<vmem>>, vector<4x256xf32>,
    %c0_24 = arith.constant 0 : index
    %c128_25 = arith.constant 128 : index
    %48 = vector.load %arg8[%c0_24, %c128_25] : memref<4x512xf32, #tpu.memory_space<vmem>>, vector<4x256xf32>
    %c32 = arith.constant 32 : index
    %c0_26 = arith.constant 0 : index
    %49 = vector.load %arg9[%c32, %c0_26] : memref<72x256xf32, #tpu.memory_space<vmem>>, vector<4x256xf32>
    tpu.vector_store %arg9[%c32, %c0_26], %48 {strides = array<i32>} : memref<72x256xf32, #tpu.memory_space<vmem>>, vector<4x256xf32>,
    %c0_27 = arith.constant 0 : index
    %c129 = arith.constant 129 : index
    %50 = vector.load %arg8[%c0_27, %c129] : memref<4x512xf32, #tpu.memory_space<vmem>>, vector<4x256xf32>
    %cst_28 = arith.constant 0.000000e+00 : f32
    %51 = vector.shape_cast %24 : vector<1x256xi1> to vector<1x256xi1>
    %52 = vector.broadcast %51 : vector<1x256xi1> to vector<4x256xi1>
    %53 = vector.broadcast %cst_28 : f32 to vector<4x256xf32>
    %54 = arith.select %52, %50, %53 : vector<4x256xi1>, vector<4x256xf32>
    %c40 = arith.constant 40 : index
    %c0_29 = arith.constant 0 : index
    %55 = vector.load %arg9[%c40, %c0_29] : memref<72x256xf32, #tpu.memory_space<vmem>>, vector<4x256xf32>
    tpu.vector_store %arg9[%c40, %c0_29], %54 {strides = array<i32>} : memref<72x256xf32, #tpu.memory_space<vmem>>, vector<4x256xf32>,
    %c0_30 = arith.constant 0 : index
    %c143 = arith.constant 143 : index
    %56 = vector.load %arg8[%c0_30, %c143] : memref<4x512xf32, #tpu.memory_space<vmem>>, vector<4x256xf32>
    %cst_31 = arith.constant 0.000000e+00 : f32
    %57 = vector.shape_cast %22 : vector<1x256xi1> to vector<1x256xi1>
    %58 = vector.broadcast %57 : vector<1x256xi1> to vector<4x256xi1>
    %59 = vector.broadcast %cst_31 : f32 to vector<4x256xf32>
    %60 = arith.select %58, %56, %59 : vector<4x256xi1>, vector<4x256xf32>
    %c48 = arith.constant 48 : index
    %c0_32 = arith.constant 0 : index
    %61 = vector.load %arg9[%c48, %c0_32] : memref<72x256xf32, #tpu.memory_space<vmem>>, vector<4x256xf32>
    tpu.vector_store %arg9[%c48, %c0_32], %60 {strides = array<i32>} : memref<72x256xf32, #tpu.memory_space<vmem>>, vector<4x256xf32>,
    %c0_33 = arith.constant 0 : index
    %c144 = arith.constant 144 : index
    %62 = vector.load %arg8[%c0_33, %c144] : memref<4x512xf32, #tpu.memory_space<vmem>>, vector<4x256xf32>
    %c56 = arith.constant 56 : index
    %c0_34 = arith.constant 0 : index
    %63 = vector.load %arg9[%c56, %c0_34] : memref<72x256xf32, #tpu.memory_space<vmem>>, vector<4x256xf32>
    tpu.vector_store %arg9[%c56, %c0_34], %62 {strides = array<i32>} : memref<72x256xf32, #tpu.memory_space<vmem>>, vector<4x256xf32>,
    %c0_35 = arith.constant 0 : index
    %c145 = arith.constant 145 : index
    %64 = vector.load %arg8[%c0_35, %c145] : memref<4x512xf32, #tpu.memory_space<vmem>>, vector<4x256xf32>
    %cst_36 = arith.constant 0.000000e+00 : f32
    %65 = vector.shape_cast %24 : vector<1x256xi1> to vector<1x256xi1>
    %66 = vector.broadcast %65 : vector<1x256xi1> to vector<4x256xi1>
    %67 = vector.broadcast %cst_36 : f32 to vector<4x256xf32>
    %68 = arith.select %66, %64, %67 : vector<4x256xi1>, vector<4x256xf32>
    %c64 = arith.constant 64 : index
    %c0_37 = arith.constant 0 : index
    %69 = vector.load %arg9[%c64, %c0_37] : memref<72x256xf32, #tpu.memory_space<vmem>>, vector<4x256xf32>
    tpu.vector_store %arg9[%c64, %c0_37], %68 {strides = array<i32>} : memref<72x256xf32, #tpu.memory_space<vmem>>, vector<4x256xf32>,
    %c0_38 = arith.constant 0 : index
    %c0_39 = arith.constant 0 : index
    %70 = vector.load %arg2[%c0_38, %c0_39] : memref<4x72xf32, #tpu.memory_space<vmem>>, vector<4x72xf32>
    %c0_40 = arith.constant 0 : index
    %c0_41 = arith.constant 0 : index
    %71 = vector.load %arg9[%c0_40, %c0_41] : memref<72x256xf32, #tpu.memory_space<vmem>>, vector<72x256xf32>
    %cst_42 = arith.constant dense<0.000000e+00> : vector<4x256xf32>
    %72 = tpu.matmul %70, %71, %cst_42 {dimension_numbers = #tpu.dot_dimension_numbers<[1], [0], [0], [1], [0, 0, 1, 1], [], []>} : vector<4x72xf32>, vector<72x256xf32>, vector<4x256xf32> -> vector<4x256xf32>
    %c0_43 = arith.constant 0 : index
    %c0_44 = arith.constant 0 : index
    %73 = vector.load %arg3[%c0_43, %c0_44] : memref<4x1xf32, #tpu.memory_space<vmem>>, vector<4x1xf32>
    %74 = vector.broadcast %73 : vector<4x1xf32> to vector<4x256xf32>
    %75 = arith.addf %72, %74 : vector<4x256xf32>
    %cst_45 = arith.constant 0.000000e+00 : f32
    %76 = vector.broadcast %cst_45 : f32 to vector<4x256xf32>
    %77 = arith.cmpf oge, %75, %76 : vector<4x256xf32>
    %cst_46 = arith.constant 0.00999999977 : f32
    %78 = vector.broadcast %cst_46 : f32 to vector<4x256xf32>
    %79 = arith.mulf %78, %75 : vector<4x256xf32>
    %80 = arith.select %77, %75, %79 : vector<4x256xi1>, vector<4x256xf32>
    %c0_47 = arith.constant 0 : index
    %c128_48 = arith.constant 128 : index
    %81 = vector.load %arg8[%c0_47, %c128_48] : memref<4x512xf32, #tpu.memory_space<vmem>>, vector<4x256xf32>
    tpu.vector_store %arg8[%c0_47, %c128_48], %80 {strides = array<i32>} : memref<4x512xf32, #tpu.memory_space<vmem>>, vector<4x256xf32>,
    %c0_49 = arith.constant 0 : index
    %c111_50 = arith.constant 111 : index
    %82 = vector.load %arg8[%c0_49, %c111_50] : memref<4x512xf32, #tpu.memory_space<vmem>>, vector<4x256xf32>
    %cst_51 = arith.constant 0.000000e+00 : f32
    %83 = vector.shape_cast %22 : vector<1x256xi1> to vector<1x256xi1>
    %84 = vector.broadcast %83 : vector<1x256xi1> to vector<4x256xi1>
    %85 = vector.broadcast %cst_51 : f32 to vector<4x256xf32>
    %86 = arith.select %84, %82, %85 : vector<4x256xi1>, vector<4x256xf32>
    %c0_52 = arith.constant 0 : index
    %c0_53 = arith.constant 0 : index
    %87 = vector.load %arg9[%c0_52, %c0_53] : memref<72x256xf32, #tpu.memory_space<vmem>>, vector<4x256xf32>
    tpu.vector_store %arg9[%c0_52, %c0_53], %86 {strides = array<i32>} : memref<72x256xf32, #tpu.memory_space<vmem>>, vector<4x256xf32>,
    %c0_54 = arith.constant 0 : index
    %c112_55 = arith.constant 112 : index
    %88 = vector.load %arg8[%c0_54, %c112_55] : memref<4x512xf32, #tpu.memory_space<vmem>>, vector<4x256xf32>
    %c8_56 = arith.constant 8 : index
    %c0_57 = arith.constant 0 : index
    %89 = vector.load %arg9[%c8_56, %c0_57] : memref<72x256xf32, #tpu.memory_space<vmem>>, vector<4x256xf32>
    tpu.vector_store %arg9[%c8_56, %c0_57], %88 {strides = array<i32>} : memref<72x256xf32, #tpu.memory_space<vmem>>, vector<4x256xf32>,
    %c0_58 = arith.constant 0 : index
    %c113_59 = arith.constant 113 : index
    %90 = vector.load %arg8[%c0_58, %c113_59] : memref<4x512xf32, #tpu.memory_space<vmem>>, vector<4x256xf32>
    %cst_60 = arith.constant 0.000000e+00 : f32
    %91 = vector.shape_cast %24 : vector<1x256xi1> to vector<1x256xi1>
    %92 = vector.broadcast %91 : vector<1x256xi1> to vector<4x256xi1>
    %93 = vector.broadcast %cst_60 : f32 to vector<4x256xf32>
    %94 = arith.select %92, %90, %93 : vector<4x256xi1>, vector<4x256xf32>
    %c16_61 = arith.constant 16 : index
    %c0_62 = arith.constant 0 : index
    %95 = vector.load %arg9[%c16_61, %c0_62] : memref<72x256xf32, #tpu.memory_space<vmem>>, vector<4x256xf32>
    tpu.vector_store %arg9[%c16_61, %c0_62], %94 {strides = array<i32>} : memref<72x256xf32, #tpu.memory_space<vmem>>, vector<4x256xf32>,
    %c0_63 = arith.constant 0 : index
    %c127_64 = arith.constant 127 : index
    %96 = vector.load %arg8[%c0_63, %c127_64] : memref<4x512xf32, #tpu.memory_space<vmem>>, vector<4x256xf32>
    %cst_65 = arith.constant 0.000000e+00 : f32
    %97 = vector.shape_cast %22 : vector<1x256xi1> to vector<1x256xi1>
    %98 = vector.broadcast %97 : vector<1x256xi1> to vector<4x256xi1>
    %99 = vector.broadcast %cst_65 : f32 to vector<4x256xf32>
    %100 = arith.select %98, %96, %99 : vector<4x256xi1>, vector<4x256xf32>
    %c24_66 = arith.constant 24 : index
    %c0_67 = arith.constant 0 : index
    %101 = vector.load %arg9[%c24_66, %c0_67] : memref<72x256xf32, #tpu.memory_space<vmem>>, vector<4x256xf32>
    tpu.vector_store %arg9[%c24_66, %c0_67], %100 {strides = array<i32>} : memref<72x256xf32, #tpu.memory_space<vmem>>, vector<4x256xf32>,
    %c0_68 = arith.constant 0 : index
    %c128_69 = arith.constant 128 : index
    %102 = vector.load %arg8[%c0_68, %c128_69] : memref<4x512xf32, #tpu.memory_space<vmem>>, vector<4x256xf32>
    %c32_70 = arith.constant 32 : index
    %c0_71 = arith.constant 0 : index
    %103 = vector.load %arg9[%c32_70, %c0_71] : memref<72x256xf32, #tpu.memory_space<vmem>>, vector<4x256xf32>
    tpu.vector_store %arg9[%c32_70, %c0_71], %102 {strides = array<i32>} : memref<72x256xf32, #tpu.memory_space<vmem>>, vector<4x256xf32>,
    %c0_72 = arith.constant 0 : index
    %c129_73 = arith.constant 129 : index
    %104 = vector.load %arg8[%c0_72, %c129_73] : memref<4x512xf32, #tpu.memory_space<vmem>>, vector<4x256xf32>
    %cst_74 = arith.constant 0.000000e+00 : f32
    %105 = vector.shape_cast %24 : vector<1x256xi1> to vector<1x256xi1>
    %106 = vector.broadcast %105 : vector<1x256xi1> to vector<4x256xi1>
    %107 = vector.broadcast %cst_74 : f32 to vector<4x256xf32>
    %108 = arith.select %106, %104, %107 : vector<4x256xi1>, vector<4x256xf32>
    %c40_75 = arith.constant 40 : index
    %c0_76 = arith.constant 0 : index
    %109 = vector.load %arg9[%c40_75, %c0_76] : memref<72x256xf32, #tpu.memory_space<vmem>>, vector<4x256xf32>
    tpu.vector_store %arg9[%c40_75, %c0_76], %108 {strides = array<i32>} : memref<72x256xf32, #tpu.memory_space<vmem>>, vector<4x256xf32>,
    %c0_77 = arith.constant 0 : index
    %c143_78 = arith.constant 143 : index
    %110 = vector.load %arg8[%c0_77, %c143_78] : memref<4x512xf32, #tpu.memory_space<vmem>>, vector<4x256xf32>
    %cst_79 = arith.constant 0.000000e+00 : f32
    %111 = vector.shape_cast %22 : vector<1x256xi1> to vector<1x256xi1>
    %112 = vector.broadcast %111 : vector<1x256xi1> to vector<4x256xi1>
    %113 = vector.broadcast %cst_79 : f32 to vector<4x256xf32>
    %114 = arith.select %112, %110, %113 : vector<4x256xi1>, vector<4x256xf32>
    %c48_80 = arith.constant 48 : index
    %c0_81 = arith.constant 0 : index
    %115 = vector.load %arg9[%c48_80, %c0_81] : memref<72x256xf32, #tpu.memory_space<vmem>>, vector<4x256xf32>
    tpu.vector_store %arg9[%c48_80, %c0_81], %114 {strides = array<i32>} : memref<72x256xf32, #tpu.memory_space<vmem>>, vector<4x256xf32>,
    %c0_82 = arith.constant 0 : index
    %c144_83 = arith.constant 144 : index
    %116 = vector.load %arg8[%c0_82, %c144_83] : memref<4x512xf32, #tpu.memory_space<vmem>>, vector<4x256xf32>
    %c56_84 = arith.constant 56 : index
    %c0_85 = arith.constant 0 : index
    %117 = vector.load %arg9[%c56_84, %c0_85] : memref<72x256xf32, #tpu.memory_space<vmem>>, vector<4x256xf32>
    tpu.vector_store %arg9[%c56_84, %c0_85], %116 {strides = array<i32>} : memref<72x256xf32, #tpu.memory_space<vmem>>, vector<4x256xf32>,
    %c0_86 = arith.constant 0 : index
    %c145_87 = arith.constant 145 : index
    %118 = vector.load %arg8[%c0_86, %c145_87] : memref<4x512xf32, #tpu.memory_space<vmem>>, vector<4x256xf32>
    %cst_88 = arith.constant 0.000000e+00 : f32
    %119 = vector.shape_cast %24 : vector<1x256xi1> to vector<1x256xi1>
    %120 = vector.broadcast %119 : vector<1x256xi1> to vector<4x256xi1>
    %121 = vector.broadcast %cst_88 : f32 to vector<4x256xf32>
    %122 = arith.select %120, %118, %121 : vector<4x256xi1>, vector<4x256xf32>
    %c64_89 = arith.constant 64 : index
    %c0_90 = arith.constant 0 : index
    %123 = vector.load %arg9[%c64_89, %c0_90] : memref<72x256xf32, #tpu.memory_space<vmem>>, vector<4x256xf32>
    tpu.vector_store %arg9[%c64_89, %c0_90], %122 {strides = array<i32>} : memref<72x256xf32, #tpu.memory_space<vmem>>, vector<4x256xf32>,
    %c0_91 = arith.constant 0 : index
    %c0_92 = arith.constant 0 : index
    %124 = vector.load %arg4[%c0_91, %c0_92] : memref<32x72xf32, #tpu.memory_space<vmem>>, vector<32x72xf32>
    %c0_93 = arith.constant 0 : index
    %c0_94 = arith.constant 0 : index
    %125 = vector.load %arg9[%c0_93, %c0_94] : memref<72x256xf32, #tpu.memory_space<vmem>>, vector<72x256xf32>
    %cst_95 = arith.constant dense<0.000000e+00> : vector<32x256xf32>
    %126 = tpu.matmul %124, %125, %cst_95 {dimension_numbers = #tpu.dot_dimension_numbers<[1], [0], [0], [1], [0, 0, 1, 1], [], []>} : vector<32x72xf32>, vector<72x256xf32>, vector<32x256xf32> -> vector<32x256xf32>
    %c0_96 = arith.constant 0 : index
    %c0_97 = arith.constant 0 : index
    %127 = vector.load %arg5[%c0_96, %c0_97] : memref<32x1xf32, #tpu.memory_space<vmem>>, vector<32x1xf32>
    %128 = vector.broadcast %127 : vector<32x1xf32> to vector<32x256xf32>
    %129 = arith.addf %126, %128 : vector<32x256xf32>
    %cst_98 = arith.constant 0.000000e+00 : f32
    %130 = vector.broadcast %cst_98 : f32 to vector<32x256xf32>
    %131 = arith.cmpf oge, %129, %130 : vector<32x256xf32>
    %cst_99 = arith.constant 0.00999999977 : f32
    %132 = vector.broadcast %cst_99 : f32 to vector<32x256xf32>
    %133 = arith.mulf %132, %129 : vector<32x256xf32>
    %134 = arith.select %131, %129, %133 : vector<32x256xi1>, vector<32x256xf32>
    %c0_100 = arith.constant 0 : index
    %c0_101 = arith.constant 0 : index
    %c0_102 = arith.constant 0 : index
    %135 = vector.load %arg6[%c0_100, %c0_101, %c0_102] : memref<1x1x256xf32, #tpu.memory_space<vmem>>, vector<1x1x256xf32>
    %136 = vector.shape_cast %135 : vector<1x1x256xf32> to vector<1x256xf32>
    %137 = vector.broadcast %136 : vector<1x256xf32> to vector<32x256xf32>
    %138 = arith.mulf %134, %137 : vector<32x256xf32>
    %c0_103 = arith.constant 0 : index
    %c0_104 = arith.constant 0 : index
    %c0_105 = arith.constant 0 : index
    %139 = vector.load %arg7[%c0_103, %c0_104, %c0_105] : memref<1x32x256xf32, #tpu.memory_space<vmem>>, vector<1x32x256xf32>
    %140 = vector.shape_cast %139 : vector<1x32x256xf32> to vector<32x256xf32>
    %141 = vector.shape_cast %138 : vector<32x256xf32> to vector<1x32x256xf32>
    tpu.vector_store %arg7[%c0_103, %c0_104, %c0_105], %141 {strides = array<i32>} : memref<1x32x256xf32, #tpu.memory_space<vmem>>, vector<1x32x256xf32>,
    return
  }
  func.func @transform_0(%arg0: i32) -> (i32, i32, i32) {
    %c0_i32 = arith.constant 0 : i32
    %c0_i32_0 = arith.constant 0 : i32
    %c0_i32_1 = arith.constant 0 : i32
    return %arg0, %c0_i32, %c0_i32_0 : i32, i32, i32
  }
  func.func @transform_1(%arg0: i32) -> (i32, i32) {
    %c0_i32 = arith.constant 0 : i32
    %c0_i32_0 = arith.constant 0 : i32
    %c0_i32_1 = arith.constant 0 : i32
    return %c0_i32, %c0_i32_0 : i32, i32
  }
  func.func @transform_2(%arg0: i32) -> (i32, i32) {
    %c0_i32 = arith.constant 0 : i32
    %c0_i32_0 = arith.constant 0 : i32
    %c0_i32_1 = arith.constant 0 : i32
    return %c0_i32, %c0_i32_0 : i32, i32
  }
  func.func @transform_3(%arg0: i32) -> (i32, i32) {
    %c0_i32 = arith.constant 0 : i32
    %c0_i32_0 = arith.constant 0 : i32
    %c0_i32_1 = arith.constant 0 : i32
    return %c0_i32, %c0_i32_0 : i32, i32
  }
  func.func @transform_4(%arg0: i32) -> (i32, i32) {
    %c0_i32 = arith.constant 0 : i32
    %c0_i32_0 = arith.constant 0 : i32
    %c0_i32_1 = arith.constant 0 : i32
    return %c0_i32, %c0_i32_0 : i32, i32
  }
  func.func @transform_5(%arg0: i32) -> (i32, i32, i32) {
    %c0_i32 = arith.constant 0 : i32
    %c0_i32_0 = arith.constant 0 : i32
    %c0_i32_1 = arith.constant 0 : i32
    return %arg0, %c0_i32, %c0_i32_0 : i32, i32, i32
  }
  func.func @transform_6(%arg0: i32) -> (i32, i32, i32) {
    %c0_i32 = arith.constant 0 : i32
    %c0_i32_0 = arith.constant 0 : i32
    %c0_i32_1 = arith.constant 0 : i32
    return %arg0, %c0_i32, %c0_i32_0 : i32, i32, i32
  }
}

</mosaic_0001>

<llo_original>
// kernel: depth_map_cnn_forward.1
$region0: #{depth_map_cnn_forward.1}
  #allocation0 [shape = 'u32[]', space=smem, size = 0x4, offset = 0x4, fixed_abs, tag = 'smem constant byte address 0x4 - core index']
  #allocation1 [shape = 'u32[144,128]{1,0:T(1,128)}', space=vmem, size = 0x12000, scoped, tag = 'internal scratch']
  #allocation2 [shape = 'f32[4,512]{1,0:T(4,128)}', space=vmem, size = 0x2000, scoped, tag = 'scratch operand']
  #allocation3 [shape = 'f32[72,256]{1,0:T(8,128)}', space=vmem, size = 0x12000, scoped, tag = 'scratch operand']
  %s0 = inlined_call_operand.vmem [shape: f32[2,4,256], index: 0, kind: input, shape index: {}]
  %s1 = inlined_call_operand.vmem [shape: f32[4,72], index: 1, kind: input, shape index: {}]
  %s2 = inlined_call_operand.vmem [shape: f32[4,1], index: 2, kind: input, shape index: {}]
  %s3 = inlined_call_operand.vmem [shape: f32[32,72], index: 3, kind: input, shape index: {}]
  %s4 = inlined_call_operand.vmem [shape: f32[32,1], index: 4, kind: input, shape index: {}]
  %s5 = inlined_call_operand.vmem [shape: f32[2,1,256], index: 5, kind: input, shape index: {}]
  %s6 = inlined_call_operand.vmem [shape: f32[2,32,256], index: 6, kind: output, shape index: {}]
  %s7 = sld [smem:[#allocation0]]
  $region57: #{depth_map_cnn_forward.1} parent=0
    _
  %s9 = ssub.s32 1, %s7
  %s10 = scalar_select 0, %s9, %s7
  loop: start=0, step=1, limit=4
  $region2: #{depth_map_cnn_forward.1} parent=0 // loop_pre_header
    _
  $region3: #{depth_map_cnn_forward.1} parent=0 // loop_header
    %s12 = sphi 0, %s16
    %p13 = scmp.ge.s32.totalorder %s12, 4
    %s22 = sphi 0, %s24
    %s25 = sphi 0, %s22
    %s26 = sphi 0, %s25
    %s42 = sphi 0, %s26
    %s46 = sphi 0, %s46
    %s48 = sphi 0, %s46
    %s49 = sphi 0, %s48
    %s63 = sphi 0, %s49
    %s67 = sphi 0, %s67
    %s69 = sphi 0, %s67
    %s70 = sphi 0, %s69
    %s84 = sphi 0, %s70
    %s88 = sphi 0, %s88
    %s90 = sphi 0, %s88
    %s91 = sphi 0, %s90
    %s105 = sphi 0, %s91
    %s109 = sphi 0, %s109
    %s111 = sphi 0, %s109
    %s112 = sphi 0, %s111
    %s126 = sphi 0, %s112
    %s132 = sphi 0, %s134
    %s135 = sphi 0, %s132
    %s136 = sphi 0, %s135
    %s152 = sphi 0, %s136
    %s158 = sphi 0, %s160
    %s161 = sphi 0, %s158
    %s162 = sphi 0, %s161
    %s178 = sphi 0, %s162
  $region4: #{depth_map_cnn_forward.1} parent=0 // loop_header_branch
    %15 = sbr.rel (%p13) target = $region8
  $region5: #{depth_map_cnn_forward.1} parent=0 // loop_body
    %s17 = ssub.s32 %s12, 1
    %s18 = ssub.s32 %s12, 2
    %s19 = sadd.s32 %s12, 1
    %s20 = ssub.s32 %s12, %s19
    %p21 = scmp.eq.s32.totalorder %s20, 0
    %s23 = sadd.s32 %s22, 1
    %s24 = scalar_select %p21, %s22, %s23
    %p27 = pneg %p21
    %p28 = scmp.eq.s32.totalorder %s12, 1
    %p29 = por %p27, %p28
    %p30 = scmp.ne.s32.totalorder %s22, %s25
    %p31 = scmp.eq.s32.totalorder %s12, 0
    %p32 = por %p30, %p31
    %p33 = scmp.ne.s32.totalorder %s22, %s25
    %p34 = scmp.eq.s32.totalorder %s17, 1
    %p35 = por %p33, %p34
    %p36 = scmp.ne.s32.totalorder %s25, %s26
    %p37 = scmp.eq.s32.totalorder %s17, 0
    %p38 = por %p36, %p37
    %p39 = scmp.ne.s32.totalorder %s25, %s26
    %p40 = scmp.eq.s32.totalorder %s18, 1
    %p41 = por %p39, %p40
    %p43 = scmp.ne.s32.totalorder %s26, %s42
    %p44 = scmp.eq.s32.totalorder %s18, 0
    %p45 = por %p43, %p44
    %s47 = sadd.s32 %s46, 1
    %p50 = scmp.eq.s32.totalorder %s12, 1
    %p51 = scmp.ne.s32.totalorder %s46, %s48
    %p52 = scmp.eq.s32.totalorder %s12, 0
    %p53 = por %p51, %p52
    %p54 = scmp.ne.s32.totalorder %s46, %s48
    %p55 = scmp.eq.s32.totalorder %s17, 1
    %p56 = por %p54, %p55
    %p57 = scmp.ne.s32.totalorder %s48, %s49
    %p58 = scmp.eq.s32.totalorder %s17, 0
    %p59 = por %p57, %p58
    %p60 = scmp.ne.s32.totalorder %s48, %s49
    %p61 = scmp.eq.s32.totalorder %s18, 1
    %p62 = por %p60, %p61
    %p64 = scmp.ne.s32.totalorder %s49, %s63
    %p65 = scmp.eq.s32.totalorder %s18, 0
    %p66 = por %p64, %p65
    %s68 = sadd.s32 %s67, 1
    %p71 = scmp.eq.s32.totalorder %s12, 1
    %p72 = scmp.ne.s32.totalorder %s67, %s69
    %p73 = scmp.eq.s32.totalorder %s12, 0
    %p74 = por %p72, %p73
    %p75 = scmp.ne.s32.totalorder %s67, %s69
    %p76 = scmp.eq.s32.totalorder %s17, 1
    %p77 = por %p75, %p76
    %p78 = scmp.ne.s32.totalorder %s69, %s70
    %p79 = scmp.eq.s32.totalorder %s17, 0
    %p80 = por %p78, %p79
    %p81 = scmp.ne.s32.totalorder %s69, %s70
    %p82 = scmp.eq.s32.totalorder %s18, 1
    %p83 = por %p81, %p82
    %p85 = scmp.ne.s32.totalorder %s70, %s84
    %p86 = scmp.eq.s32.totalorder %s18, 0
    %p87 = por %p85, %p86
    %s89 = sadd.s32 %s88, 1
    %p92 = scmp.eq.s32.totalorder %s12, 1
    %p93 = scmp.ne.s32.totalorder %s88, %s90
    %p94 = scmp.eq.s32.totalorder %s12, 0
    %p95 = por %p93, %p94
    %p96 = scmp.ne.s32.totalorder %s88, %s90
    %p97 = scmp.eq.s32.totalorder %s17, 1
    %p98 = por %p96, %p97
    %p99 = scmp.ne.s32.totalorder %s90, %s91
    %p100 = scmp.eq.s32.totalorder %s17, 0
    %p101 = por %p99, %p100
    %p102 = scmp.ne.s32.totalorder %s90, %s91
    %p103 = scmp.eq.s32.totalorder %s18, 1
    %p104 = por %p102, %p103
    %p106 = scmp.ne.s32.totalorder %s91, %s105
    %p107 = scmp.eq.s32.totalorder %s18, 0
    %p108 = por %p106, %p107
    %s110 = sadd.s32 %s109, 1
    %p113 = scmp.eq.s32.totalorder %s12, 1
    %p114 = scmp.ne.s32.totalorder %s109, %s111
    %p115 = scmp.eq.s32.totalorder %s12, 0
    %p116 = por %p114, %p115
    %p117 = scmp.ne.s32.totalorder %s109, %s111
    %p118 = scmp.eq.s32.totalorder %s17, 1
    %p119 = por %p117, %p118
    %p120 = scmp.ne.s32.totalorder %s111, %s112
    %p121 = scmp.eq.s32.totalorder %s17, 0
    %p122 = por %p120, %p121
    %p123 = scmp.ne.s32.totalorder %s111, %s112
    %p124 = scmp.eq.s32.totalorder %s18, 1
    %p125 = por %p123, %p124
    %p127 = scmp.ne.s32.totalorder %s112, %s126
    %p128 = scmp.eq.s32.totalorder %s18, 0
    %p129 = por %p127, %p128
    %s130 = ssub.s32 %s12, %s19
    %p131 = scmp.eq.s32.totalorder %s130, 0
    %s133 = sadd.s32 %s132, 1
    %s134 = scalar_select %p131, %s132, %s133
    %p137 = pneg %p131
    %p138 = scmp.eq.s32.totalorder %s12, 1
    %p139 = por %p137, %p138
    %p140 = scmp.ne.s32.totalorder %s132, %s135
    %p141 = scmp.eq.s32.totalorder %s12, 0
    %p142 = por %p140, %p141
    %p143 = scmp.ne.s32.totalorder %s132, %s135
    %p144 = scmp.eq.s32.totalorder %s17, 1
    %p145 = por %p143, %p144
    %p146 = scmp.ne.s32.totalorder %s135, %s136
    %p147 = scmp.eq.s32.totalorder %s17, 0
    %p148 = por %p146, %p147
    %p149 = scmp.ne.s32.totalorder %s135, %s136
    %p150 = scmp.eq.s32.totalorder %s18, 1
    %p151 = por %p149, %p150
    %p153 = scmp.ne.s32.totalorder %s136, %s152
    %p154 = scmp.eq.s32.totalorder %s18, 0
    %p155 = por %p153, %p154
    %s156 = ssub.s32 %s12, %s19
    %p157 = scmp.eq.s32.totalorder %s156, 0
    %s159 = sadd.s32 %s158, 1
    %s160 = scalar_select %p157, %s158, %s159
    %p163 = pneg %p157
    %p164 = scmp.eq.s32.totalorder %s12, 1
    %p165 = por %p163, %p164
    %p166 = scmp.ne.s32.totalorder %s158, %s161
    %p167 = scmp.eq.s32.totalorder %s12, 0
    %p168 = por %p166, %p167
    %p169 = scmp.ne.s32.totalorder %s158, %s161
    %p170 = scmp.eq.s32.totalorder %s17, 1
    %p171 = por %p169, %p170
    %p172 = scmp.ne.s32.totalorder %s161, %s162
    %p173 = scmp.eq.s32.totalorder %s17, 0
    %p174 = por %p172, %p173
    %p175 = scmp.ne.s32.totalorder %s161, %s162
    %p176 = scmp.eq.s32.totalorder %s18, 1
    %p177 = por %p175, %p176
    %p179 = scmp.ne.s32.totalorder %s162, %s178
    %p180 = scmp.eq.s32.totalorder %s18, 0
    %p181 = por %p179, %p180
    %p182 = scmp.le.s32.totalorder 1, %s12
    %p183 = scmp.lt.s32.totalorder %s12, 3
    %p184 = pnand %p182, %p183
    %p185 = pneg %p184
    // Predicated region
    $region9: #{depth_map_cnn_forward.1} parent=5 // pred_check
      _
    $region10: #{depth_map_cnn_forward.1} parent=5 // pred_check_branch
      %187 = sbr.rel (%p184) target = $region12
    $region11: #{depth_map_cnn_forward.1} parent=5 // pred_region
      %s188 = ssub.s32 %s12, 1
      // Predicated region
      $region13: #{depth_map_cnn_forward.1} parent=11 // pred_check
        %p189 = pneg %p59
      $region14: #{depth_map_cnn_forward.1} parent=11 // pred_check_branch
        %191 = sbr.rel (%p189) target = $region16
      $region15: #{depth_map_cnn_forward.1} parent=11 // pred_region
        _
      $region16: #{depth_map_cnn_forward.1} parent=11 // pred_fallthru
        _
      // Predicated region
      $region17: #{depth_map_cnn_forward.1} parent=11 // pred_check
        %p192 = pneg %p80
      $region18: #{depth_map_cnn_forward.1} parent=11 // pred_check_branch
        %194 = sbr.rel (%p192) target = $region20
      $region19: #{depth_map_cnn_forward.1} parent=11 // pred_region
        _
      $region20: #{depth_map_cnn_forward.1} parent=11 // pred_fallthru
        _
      // Predicated region
      $region21: #{depth_map_cnn_forward.1} parent=11 // pred_check
        %p195 = pneg %p101
      $region22: #{depth_map_cnn_forward.1} parent=11 // pred_check_branch
        %197 = sbr.rel (%p195) target = $region24
      $region23: #{depth_map_cnn_forward.1} parent=11 // pred_region
        _
      $region24: #{depth_map_cnn_forward.1} parent=11 // pred_fallthru
        _
      // Predicated region
      $region25: #{depth_map_cnn_forward.1} parent=11 // pred_check
        %p198 = pneg %p122
      $region26: #{depth_map_cnn_forward.1} parent=11 // pred_check_branch
        %200 = sbr.rel (%p198) target = $region28
      $region27: #{depth_map_cnn_forward.1} parent=11 // pred_region
        _
      $region28: #{depth_map_cnn_forward.1} parent=11 // pred_fallthru
        _
    $region12: #{depth_map_cnn_forward.1} parent=5 // pred_fallthru
      _
    %p201 = scmp.lt.s32.totalorder %s12, 2
    // Predicated region
    $region29: #{depth_map_cnn_forward.1} parent=5 // pred_check
      %p202 = pneg %p201
    $region30: #{depth_map_cnn_forward.1} parent=5 // pred_check_branch
      %204 = sbr.rel (%p202) target = $region32
    $region31: #{depth_map_cnn_forward.1} parent=5 // pred_region
      // Predicated region
      $region33: #{depth_map_cnn_forward.1} parent=31 // pred_check
        %p205 = pneg %p32
      $region34: #{depth_map_cnn_forward.1} parent=31 // pred_check_branch
        %207 = sbr.rel (%p205) target = $region36
      $region35: #{depth_map_cnn_forward.1} parent=31 // pred_region
        %p208 = scmp.lt.s32.totalorder %s12, 1
        %s209 = scalar_select %p208, %s12, 1
        %s210 = smul.addr %s209, 2
        %s211 = smul.addr %s210, 4
        %s212 = scalar_lea.vmem %s0, %s211
      $region36: #{depth_map_cnn_forward.1} parent=31 // pred_fallthru
        _
      // Predicated region
      $region37: #{depth_map_cnn_forward.1} parent=31 // pred_check
        %p213 = pneg %p142
      $region38: #{depth_map_cnn_forward.1} parent=31 // pred_check_branch
        %215 = sbr.rel (%p213) target = $region40
      $region39: #{depth_map_cnn_forward.1} parent=31 // pred_region
        %p216 = scmp.lt.s32.totalorder %s12, 1
        %s217 = scalar_select %p216, %s12, 1
        %s218 = smul.addr %s217, 2
        %s219 = scalar_lea.vmem %s5, %s218
      $region40: #{depth_map_cnn_forward.1} parent=31 // pred_fallthru
        _
    $region32: #{depth_map_cnn_forward.1} parent=5 // pred_fallthru
      _
    %p220 = scmp.le.s32.totalorder 1, %s12
    %p221 = scmp.lt.s32.totalorder %s12, 3
    %p222 = pnand %p220, %p221
    %p223 = pneg %p222
    // Predicated region
    $region41: #{depth_map_cnn_forward.1} parent=5 // pred_check
      _
    $region42: #{depth_map_cnn_forward.1} parent=5 // pred_check_branch
      %225 = sbr.rel (%p222) target = $region44
    $region43: #{depth_map_cnn_forward.1} parent=5 // pred_region
      %s226 = ssub.s32 %s12, 1
      %p227 = scmp.lt.s32.totalorder %s17, 1
      %s228 = scalar_select %p227, %s17, 1
      %s229 = smul.addr %s228, 2
      %s230 = smul.addr %s229, 4
      %s231 = scalar_lea.vmem %s0, %s230
      %p232 = pneg %p38
      %p233 = pneg %p35
      %p234 = pneg %p59
      %p235 = pneg %p56
      %p236 = pneg %p80
      %p237 = pneg %p77
      %p238 = pneg %p101
      %p239 = pneg %p98
      %p240 = pneg %p122
      %p241 = pneg %p119
      %p242 = scmp.lt.s32.totalorder %s17, 1
      %s243 = scalar_select %p242, %s17, 1
      %s244 = smul.addr %s243, 2
      %s245 = scalar_lea.vmem %s5, %s244
      %p246 = pneg %p148
      %p247 = pneg %p145
      %p248 = pneg %p174
      %p249 = pneg %p171
      %p250 = scmp.lt.s32.totalorder %s17, 1
      %s251 = scalar_select %p250, %s17, 1
      %s252 = smul.addr %s251, 8
      %s253 = smul.addr %s252, 8
      %s254 = scalar_lea.vmem %s6, %s253
      %p255 = scmp.lt.s32.totalorder %s17, 1
      %s256 = scalar_select %p255, %s17, 1
      %s257 = smul.addr %s256, 2
      %s258 = smul.addr %s257, 4
      %s259 = scalar_lea.vmem %s0, %s258
      %p260 = scmp.lt.s32.totalorder %s17, 1
      %s261 = scalar_select %p260, %s17, 1
      %s262 = smul.addr %s261, 2
      %s263 = scalar_lea.vmem %s5, %s262
      %p264 = scmp.lt.s32.totalorder %s17, 1
      %s265 = scalar_select %p264, %s17, 1
      %s266 = smul.addr %s265, 8
      %s267 = smul.addr %s266, 8
      %s268 = scalar_lea.vmem %s6, %s267
      %269 = vst [vmem:[#allocation2] sm:$0xff] 0.0
      %270 = vst [vmem:[#allocation2 + $0x8] sm:$0xff] 0.0
      %271 = vst [vmem:[#allocation3] sm:$0xff] 0.0
      %272 = vst [vmem:[#allocation3 + $0x8] sm:$0xff] 0.0
      %273 = vst [vmem:[#allocation3 + $0x10] sm:$0xff] 0.0
      %274 = vst [vmem:[#allocation3 + $0x18] sm:$0xff] 0.0
      %275 = vst [vmem:[#allocation3 + $0x20] sm:$0xff] 0.0
      %276 = vst [vmem:[#allocation3 + $0x28] sm:$0xff] 0.0
      %277 = vst [vmem:[#allocation3 + $0x30] sm:$0xff] 0.0
      %278 = vst [vmem:[#allocation3 + $0x38] sm:$0xff] 0.0
      %279 = vst [vmem:[#allocation3 + $0x40] sm:$0xff] 0.0
      %280 = vst [vmem:[#allocation3 + $0x48] sm:$0xff] 0.0
      %281 = vst [vmem:[#allocation3 + $0x50] sm:$0xff] 0.0
      %282 = vst [vmem:[#allocation3 + $0x58] sm:$0xff] 0.0
      %283 = vst [vmem:[#allocation3 + $0x60] sm:$0xff] 0.0
      %284 = vst [vmem:[#allocation3 + $0x68] sm:$0xff] 0.0
      %285 = vst [vmem:[#allocation3 + $0x70] sm:$0xff] 0.0
      %286 = vst [vmem:[#allocation3 + $0x78] sm:$0xff] 0.0
      %287 = vst [vmem:[#allocation3 + $0x80] sm:$0xff] 0.0
      %288 = vst [vmem:[#allocation3 + $0x88] sm:$0xff] 0.0
      %v289 = vlaneseq
      %v290 = vand.u32 %v289, 127
      %v291 = vadd.s32 %v290, 128
      %vm292 = vcmp.lt.s32.totalorder %v290, 0
      %v293 = vsub.s32 0, %v290
      %v294 = vsel %vm292, %v293, %v290
      %v295 = vshrl.u32 %v294, 4
      %v296 = vand.u32 %v294, 15
      %v297 = vsub.s32 0, %v296
      %v298 = vsel %vm292, %v297, %v296
      %vm299 = vcmp.lt.s32.totalorder %v291, 0
      %v300 = vsub.s32 0, %v291
      %v301 = vsel %vm299, %v300, %v291
      %v302 = vshrl.u32 %v301, 4
      %v303 = vand.u32 %v301, 15
      %v304 = vsub.s32 0, %v303
      %v305 = vsel %vm299, %v304, %v303
      %vm306 = vcmp.ne.s32.totalorder %v298, 0
      %vm307 = vcmp.ne.s32.totalorder %v305, 0
      %vm308 = vcmp.lt.s32.totalorder %v298, 0
      %vm309 = vcmp.lt.s32.totalorder %v305, 0
      %vm310 = vmand %vm308, %vm306
      %vm311 = vmand %vm309, %vm307
      %v312 = vadd.s32 %v298, 16
      %v313 = vadd.s32 %v305, 16
      %v314 = vsel %vm310, %v312, %v298
      %v315 = vsel %vm311, %v313, %v305
      %vm316 = vcmp.ge.s32.totalorder %v314, 1
      %vm317 = vcmp.ge.s32.totalorder %v315, 1
      %vm318 = vcmp.le.s32.totalorder %v314, 14
      %vm319 = vcmp.le.s32.totalorder %v315, 14
      %v320 = vld [vmem:[%s259] sm:$0xff]
      %321 = vst [vmem:[#allocation2 + $0x4] sm:$0xff] %v320
      %v322 = vld [vmem:[#allocation2] sm:$0xff]
      %v323 = vld [vmem:[#allocation2 + $0x8] sm:$0xf]
      %v324 = vsel %vm316, 1, 0
      %v325 = vsel %vm317, 1, 0
      %vm326 = vcmp.eq.s32.totalorder %v324, 1
      %vm327 = vcmp.eq.s32.totalorder %v325, 1
      %v330 = vcombine.high %v322, %v322
      %331 = vrot.lane.b32.xlu0 %v322, 17
      %v332 = vpop.permute.xlu0 %331
      %333 = vrot.lane.b32.xlu0 %v330, 17
      %v334 = vpop.permute.xlu0 %333
      %335 = vrot.lane.b32.xlu0 %v323, 17
      %v336 = vpop.permute.xlu0 %335
      %vm337 = vcmask 138240
      %v338 = vsel %vm337, %v332, %v334
      %v339 = vsel %vm337, %v334, %v336
      %v342 = vsel %vm326, %v338, 0.0
      %v343 = vsel %vm327, %v339, 0.0
      %344 = vst [vmem:[#allocation3] sm:$0xf] %v342
      %345 = vst [vmem:[#allocation3 + $0x8] sm:$0xf] %v343
      %v346 = vld [vmem:[#allocation2] sm:$0xff]
      %v347 = vld [vmem:[#allocation2 + $0x8] sm:$0xf]
      %v350 = vcombine.high %v346, %v346
      %351 = vrot.lane.b32.xlu0 %v346, 16
      %v352 = vpop.permute.xlu0 %351
      %353 = vrot.lane.b32.xlu0 %v350, 16
      %v354 = vpop.permute.xlu0 %353
      %355 = vrot.lane.b32.xlu0 %v347, 16
      %v356 = vpop.permute.xlu0 %355
      %vm357 = vcmask 130048
      %v358 = vsel %vm357, %v352, %v354
      %v359 = vsel %vm357, %v354, %v356
      %362 = vst [vmem:[#allocation3 + $0x10] sm:$0xf] %v358
      %363 = vst [vmem:[#allocation3 + $0x18] sm:$0xf] %v359
      %v364 = vld [vmem:[#allocation2] sm:$0xff]
      %v365 = vld [vmem:[#allocation2 + $0x8] sm:$0xf]
      %v366 = vsel %vm318, 1, 0
      %v367 = vsel %vm319, 1, 0
      %vm368 = vcmp.eq.s32.totalorder %v366, 1
      %vm369 = vcmp.eq.s32.totalorder %v367, 1
      %v372 = vcombine.high %v364, %v364
      %373 = vrot.lane.b32.xlu0 %v364, 15
      %v374 = vpop.permute.xlu0 %373
      %375 = vrot.lane.b32.xlu0 %v372, 15
      %v376 = vpop.permute.xlu0 %375
      %377 = vrot.lane.b32.xlu0 %v365, 15
      %v378 = vpop.permute.xlu0 %377
      %vm379 = vcmask 121856
      %v380 = vsel %vm379, %v374, %v376
      %v381 = vsel %vm379, %v376, %v378
      %v384 = vsel %vm368, %v380, 0.0
      %v385 = vsel %vm369, %v381, 0.0
      %386 = vst [vmem:[#allocation3 + $0x20] sm:$0xf] %v384
      %387 = vst [vmem:[#allocation3 + $0x28] sm:$0xf] %v385
      %v388 = vld [vmem:[#allocation2] sm:$0xff]
      %v389 = vld [vmem:[#allocation2 + $0x8] sm:$0xf]
      %v392 = vcombine.high %v388, %v388
      %393 = vrot.lane.b32.xlu0 %v388, 1
      %v394 = vpop.permute.xlu0 %393
      %395 = vrot.lane.b32.xlu0 %v392, 1
      %v396 = vpop.permute.xlu0 %395
      %397 = vrot.lane.b32.xlu0 %v389, 1
      %v398 = vpop.permute.xlu0 %397
      %vm399 = vcmask 7168
      %v400 = vsel %vm399, %v394, %v396
      %v401 = vsel %vm399, %v396, %v398
      %v404 = vsel %vm326, %v400, 0.0
      %v405 = vsel %vm327, %v401, 0.0
      %406 = vst [vmem:[#allocation3 + $0x30] sm:$0xf] %v404
      %407 = vst [vmem:[#allocation3 + $0x38] sm:$0xf] %v405
      %v408 = vld [vmem:[#allocation2 + $0x4] sm:$0xff]
      %v410 = vcombine.high %v408, %v408
      %412 = vst [vmem:[#allocation3 + $0x40] sm:$0xf] %v408
      %413 = vst [vmem:[#allocation3 + $0x48] sm:$0xf] %v410
      %v414 = vld [vmem:[#allocation2 + $0x4] sm:$0xff]
      %v415 = vld [vmem:[#allocation2 + $0xc] sm:$0xf]
      %v418 = vcombine.high %v414, %v414
      %419 = vrot.lane.b32.xlu0 %v414, 127
      %v420 = vpop.permute.xlu0 %419
      %421 = vrot.lane.b32.xlu0 %v418, 127
      %v422 = vpop.permute.xlu0 %421
      %423 = vrot.lane.b32.xlu0 %v415, 127
      %v424 = vpop.permute.xlu0 %423
      %vm425 = vcmask 1039360
      %v426 = vsel %vm425, %v420, %v422
      %v427 = vsel %vm425, %v422, %v424
      %v430 = vsel %vm368, %v426, 0.0
      %v431 = vsel %vm369, %v427, 0.0
      %432 = vst [vmem:[#allocation3 + $0x50] sm:$0xf] %v430
      %433 = vst [vmem:[#allocation3 + $0x58] sm:$0xf] %v431
      %v434 = vld [vmem:[#allocation2 + $0x4] sm:$0xff]
      %v435 = vld [vmem:[#allocation2 + $0xc] sm:$0xf]
      %v438 = vcombine.high %v434, %v434
      %439 = vrot.lane.b32.xlu0 %v434, 113
      %v440 = vpop.permute.xlu0 %439
      %441 = vrot.lane.b32.xlu0 %v438, 113
      %v442 = vpop.permute.xlu0 %441
      %443 = vrot.lane.b32.xlu0 %v435, 113
      %v444 = vpop.permute.xlu0 %443
      %vm445 = vcmask 924672
      %v446 = vsel %vm445, %v440, %v442
      %v447 = vsel %vm445, %v442, %v444
      %v450 = vsel %vm326, %v446, 0.0
      %v451 = vsel %vm327, %v447, 0.0
      %452 = vst [vmem:[#allocation3 + $0x60] sm:$0xf] %v450
      %453 = vst [vmem:[#allocation3 + $0x68] sm:$0xf] %v451
      %v454 = vld [vmem:[#allocation2 + $0x4] sm:$0xff]
      %v455 = vld [vmem:[#allocation2 + $0xc] sm:$0xf]
      %v458 = vcombine.high %v454, %v454
      %459 = vrot.lane.b32.xlu0 %v454, 112
      %v460 = vpop.permute.xlu0 %459
      %461 = vrot.lane.b32.xlu0 %v458, 112
      %v462 = vpop.permute.xlu0 %461
      %463 = vrot.lane.b32.xlu0 %v455, 112
      %v464 = vpop.permute.xlu0 %463
      %vm465 = vcmask 916480
      %v466 = vsel %vm465, %v460, %v462
      %v467 = vsel %vm465, %v462, %v464
      %470 = vst [vmem:[#allocation3 + $0x70] sm:$0xf] %v466
      %471 = vst [vmem:[#allocation3 + $0x78] sm:$0xf] %v467
      %v472 = vld [vmem:[#allocation2 + $0x4] sm:$0xff]
      %v473 = vld [vmem:[#allocation2 + $0xc] sm:$0xf]
      %v476 = vcombine.high %v472, %v472
      %477 = vrot.lane.b32.xlu0 %v472, 111
      %v478 = vpop.permute.xlu0 %477
      %479 = vrot.lane.b32.xlu0 %v476, 111
      %v480 = vpop.permute.xlu0 %479
      %481 = vrot.lane.b32.xlu0 %v473, 111
      %v482 = vpop.permute.xlu0 %481
      %vm483 = vcmask 908288
      %v484 = vsel %vm483, %v478, %v480
      %v485 = vsel %vm483, %v480, %v482
      %v488 = vsel %vm368, %v484, 0.0
      %v489 = vsel %vm369, %v485, 0.0
      %490 = vst [vmem:[#allocation3 + $0x80] sm:$0xf] %v488
      %491 = vst [vmem:[#allocation3 + $0x88] sm:$0xf] %v489
      %v492 = vld [vmem:[%s1] sm:$0xf]
      %v493 = vld [vmem:[#allocation3] sm:$0xff]
      %v494 = vld [vmem:[#allocation3 + $0x8] sm:$0xff]
      %v495 = vld [vmem:[#allocation3 + $0x10] sm:$0xff]
      %v496 = vld [vmem:[#allocation3 + $0x18] sm:$0xff]
      %v497 = vld [vmem:[#allocation3 + $0x20] sm:$0xff]
      %v498 = vld [vmem:[#allocation3 + $0x28] sm:$0xff]
      %v499 = vld [vmem:[#allocation3 + $0x30] sm:$0xff]
      %v500 = vld [vmem:[#allocation3 + $0x38] sm:$0xff]
      %v501 = vld [vmem:[#allocation3 + $0x40] sm:$0xff]
      %v502 = vld [vmem:[#allocation3 + $0x48] sm:$0xff]
      %v503 = vld [vmem:[#allocation3 + $0x50] sm:$0xff]
      %v504 = vld [vmem:[#allocation3 + $0x58] sm:$0xff]
      %v505 = vld [vmem:[#allocation3 + $0x60] sm:$0xff]
      %v506 = vld [vmem:[#allocation3 + $0x68] sm:$0xff]
      %v507 = vld [vmem:[#allocation3 + $0x70] sm:$0xff]
      %v508 = vld [vmem:[#allocation3 + $0x78] sm:$0xff]
      %v509 = vld [vmem:[#allocation3 + $0x80] sm:$0xff]
      %v510 = vld [vmem:[#allocation3 + $0x88] sm:$0xff]
      %v511 = vld [vmem:[%s2] sm:$0xf]
      %513 = vset.pattern.permute.xlu0 0
      %514 = vperm.xlu0 %513, %v511
      %v515 = vpop.permute.xlu0 %514
      %vm517 = vcmask 588800
      %v519 = vsel %vm517, %v492, 0
      %521 = vmatprep.subr.mxu0 %v494
      %522 = vmatpush1.msra.mxu0 %v493
      %523 = vmatprep.subr.mxu0 %v496
      %524 = vmatpush1.msra.mxu0 %v495
      %525 = vmatprep.subr.mxu0 %v498
      %526 = vmatpush1.msra.mxu0 %v497
      %527 = vmatprep.subr.mxu0 %v500
      %528 = vmatpush1.msra.mxu0 %v499
      %529 = vmatprep.subr.mxu0 %v502
      %530 = vmatpush1.msra.mxu0 %v501
      %531 = vmatprep.subr.mxu0 %v504
      %532 = vmatpush1.msra.mxu0 %v503
      %533 = vmatprep.subr.mxu0 %v506
      %534 = vmatpush1.msra.mxu0 %v505
      %535 = vmatprep.subr.mxu0 %v508
      %536 = vmatpush1.msra.mxu0 %v507
      %537 = vmatprep.subr.mxu0 %v510
      %538 = vmatpush1.msra.mxu0 %v509
      %539 = vmatprep.subr.mxu0 0.0
      %540 = vmatpush1.msra.mxu0 0.0
      %541 = vmatprep.subr.mxu0 0.0
      %542 = vmatpush1.msra.mxu0 0.0
      %543 = vmatprep.subr.mxu0 0.0
      %544 = vmatpush1.msra.mxu0 0.0
      %545 = vmatprep.subr.mxu0 0.0
      %546 = vmatpush1.msra.mxu0 0.0
      %547 = vmatprep.subr.mxu0 0.0
      %548 = vmatpush1.msra.mxu0 0.0
      %549 = vmatprep.subr.mxu0 0.0
      %550 = vmatpush1.msra.mxu0 0.0
      %551 = vmatprep.subr.mxu0 0.0
      %552 = vmatpush1.msra.mxu0 0.0
      %553 = vmatprep.subr.mxu0 0.0
      %554 = vmatpush1.msra.mxu0 0.0
      %555 = vmatprep.subr.mxu0 0.0
      %556 = vmatpush1.msra.mxu0 0.0
      %557 = vmatprep.subr.mxu0 0.0
      %558 = vmatpush1.msra.mxu0 0.0
      %559 = vmatprep.subr.mxu0 0.0
      %560 = vmatpush1.msra.mxu0 0.0
      %561 = vmatprep.subr.mxu0 0.0
      %562 = vmatpush1.msra.mxu0 0.0
      %563 = vmatprep.subr.mxu0 0.0
      %564 = vmatpush1.msra.mxu0 0.0
      %565 = vmatprep.subr.mxu0 0.0
      %566 = vmatpush1.msra.mxu0 0.0
      %567 = vmatprep.subr.mxu0 0.0
      %568 = vmatpush1.msra.mxu0 0.0
      %569 = vmatprep.subr.mxu0 0.0
      %570 = vmatpush1.msra.mxu0 0.0
      %571 = vmatprep.subr.mxu0 0.0
      %572 = vmatpush1.msra.mxu0 0.0
      %573 = vmatprep.subr.mxu0 0.0
      %574 = vmatpush1.msra.mxu0 0.0
      %575 = vmatprep.subr.mxu0 0.0
      %576 = vmatpush1.msra.mxu0 0.0
      %577 = vmatprep.subr.mxu0 0.0
      %578 = vmatpush1.msra.mxu0 0.0
      %579 = vmatprep.subr.mxu0 0.0
      %580 = vmatpush1.msra.mxu0 0.0
      %581 = vmatprep.subr.mxu0 0.0
      %582 = vmatpush1.msra.mxu0 0.0
      %583 = vmatprep.subr.mxu0 0.0
      %584 = vmatpush1.msra.mxu0 0.0
      %585 = vmatprep.mubr.f32.mxu0 0.0
      %586 = vmatmul.mubr.f32.gmra.mrb[0].mxu0 %v519
      %v587 = vpop.f32.mrb[0].mxu0
      %v588 = vadd.f32 %v515, %v587
      %v589 = vpop.f32.mrb[0].mxu0
      %v590 = vadd.f32 %v515, %v589
      %591 = vdwg.mxu0
      %vm592 = vcmp.ge.f32.partialorder %v588, 0.0
      %vm593 = vcmp.ge.f32.partialorder %v590, 0.0
      %v594 = vmul.f32 %v588, 0.01
      %v595 = vmul.f32 %v590, 0.01
      %v596 = vsel %vm592, %v588, %v594
      %v597 = vsel %vm593, %v590, %v595
      %v600 = vcombine.low %v596, %v597
      %602 = vst [vmem:[#allocation2 + $0x4] sm:$0xff] %v600
      %v603 = vld [vmem:[#allocation2] sm:$0xff]
      %v604 = vld [vmem:[#allocation2 + $0x8] sm:$0xf]
      %v607 = vcombine.high %v603, %v603
      %608 = vrot.lane.b32.xlu0 %v603, 17
      %v609 = vpop.permute.xlu0 %608
      %610 = vrot.lane.b32.xlu0 %v607, 17
      %v611 = vpop.permute.xlu0 %610
      %612 = vrot.lane.b32.xlu0 %v604, 17
      %v613 = vpop.permute.xlu0 %612
      %v614 = vsel %vm337, %v609, %v611
      %v615 = vsel %vm337, %v611, %v613
      %v618 = vsel %vm326, %v614, 0.0
      %v619 = vsel %vm327, %v615, 0.0
      %620 = vst [vmem:[#allocation3] sm:$0xf] %v618
      %621 = vst [vmem:[#allocation3 + $0x8] sm:$0xf] %v619
      %v622 = vld [vmem:[#allocation2] sm:$0xff]
      %v623 = vld [vmem:[#allocation2 + $0x8] sm:$0xf]
      %v626 = vcombine.high %v622, %v622
      %627 = vrot.lane.b32.xlu0 %v622, 16
      %v628 = vpop.permute.xlu0 %627
      %629 = vrot.lane.b32.xlu0 %v626, 16
      %v630 = vpop.permute.xlu0 %629
      %631 = vrot.lane.b32.xlu0 %v623, 16
      %v632 = vpop.permute.xlu0 %631
      %v633 = vsel %vm357, %v628, %v630
      %v634 = vsel %vm357, %v630, %v632
      %637 = vst [vmem:[#allocation3 + $0x10] sm:$0xf] %v633
      %638 = vst [vmem:[#allocation3 + $0x18] sm:$0xf] %v634
      %v639 = vld [vmem:[#allocation2] sm:$0xff]
      %v640 = vld [vmem:[#allocation2 + $0x8] sm:$0xf]
      %v643 = vcombine.high %v639, %v639
      %644 = vrot.lane.b32.xlu0 %v639, 15
      %v645 = vpop.permute.xlu0 %644
      %646 = vrot.lane.b32.xlu0 %v643, 15
      %v647 = vpop.permute.xlu0 %646
      %648 = vrot.lane.b32.xlu0 %v640, 15
      %v649 = vpop.permute.xlu0 %648
      %v650 = vsel %vm379, %v645, %v647
      %v651 = vsel %vm379, %v647, %v649
      %v654 = vsel %vm368, %v650, 0.0
      %v655 = vsel %vm369, %v651, 0.0
      %656 = vst [vmem:[#allocation3 + $0x20] sm:$0xf] %v654
      %657 = vst [vmem:[#allocation3 + $0x28] sm:$0xf] %v655
      %v658 = vld [vmem:[#allocation2] sm:$0xff]
      %v659 = vld [vmem:[#allocation2 + $0x8] sm:$0xf]
      %v662 = vcombine.high %v658, %v658
      %663 = vrot.lane.b32.xlu0 %v658, 1
      %v664 = vpop.permute.xlu0 %663
      %665 = vrot.lane.b32.xlu0 %v662, 1
      %v666 = vpop.permute.xlu0 %665
      %667 = vrot.lane.b32.xlu0 %v659, 1
      %v668 = vpop.permute.xlu0 %667
      %v669 = vsel %vm399, %v664, %v666
      %v670 = vsel %vm399, %v666, %v668
      %v673 = vsel %vm326, %v669, 0.0
      %v674 = vsel %vm327, %v670, 0.0
      %675 = vst [vmem:[#allocation3 + $0x30] sm:$0xf] %v673
      %676 = vst [vmem:[#allocation3 + $0x38] sm:$0xf] %v674
      %v677 = vld [vmem:[#allocation2 + $0x4] sm:$0xff]
      %v679 = vcombine.high %v677, %v677
      %681 = vst [vmem:[#allocation3 + $0x40] sm:$0xf] %v677
      %682 = vst [vmem:[#allocation3 + $0x48] sm:$0xf] %v679
      %v683 = vld [vmem:[#allocation2 + $0x4] sm:$0xff]
      %v684 = vld [vmem:[#allocation2 + $0xc] sm:$0xf]
      %v687 = vcombine.high %v683, %v683
      %688 = vrot.lane.b32.xlu0 %v683, 127
      %v689 = vpop.permute.xlu0 %688
      %690 = vrot.lane.b32.xlu0 %v687, 127
      %v691 = vpop.permute.xlu0 %690
      %692 = vrot.lane.b32.xlu0 %v684, 127
      %v693 = vpop.permute.xlu0 %692
      %v694 = vsel %vm425, %v689, %v691
      %v695 = vsel %vm425, %v691, %v693
      %v698 = vsel %vm368, %v694, 0.0
      %v699 = vsel %vm369, %v695, 0.0
      %700 = vst [vmem:[#allocation3 + $0x50] sm:$0xf] %v698
      %701 = vst [vmem:[#allocation3 + $0x58] sm:$0xf] %v699
      %v702 = vld [vmem:[#allocation2 + $0x4] sm:$0xff]
      %v703 = vld [vmem:[#allocation2 + $0xc] sm:$0xf]
      %v706 = vcombine.high %v702, %v702
      %707 = vrot.lane.b32.xlu0 %v702, 113
      %v708 = vpop.permute.xlu0 %707
      %709 = vrot.lane.b32.xlu0 %v706, 113
      %v710 = vpop.permute.xlu0 %709
      %711 = vrot.lane.b32.xlu0 %v703, 113
      %v712 = vpop.permute.xlu0 %711
      %v713 = vsel %vm445, %v708, %v710
      %v714 = vsel %vm445, %v710, %v712
      %v717 = vsel %vm326, %v713, 0.0
      %v718 = vsel %vm327, %v714, 0.0
      %719 = vst [vmem:[#allocation3 + $0x60] sm:$0xf] %v717
      %720 = vst [vmem:[#allocation3 + $0x68] sm:$0xf] %v718
      %v721 = vld [vmem:[#allocation2 + $0x4] sm:$0xff]
      %v722 = vld [vmem:[#allocation2 + $0xc] sm:$0xf]
      %v725 = vcombine.high %v721, %v721
      %726 = vrot.lane.b32.xlu0 %v721, 112
      %v727 = vpop.permute.xlu0 %726
      %728 = vrot.lane.b32.xlu0 %v725, 112
      %v729 = vpop.permute.xlu0 %728
      %730 = vrot.lane.b32.xlu0 %v722, 112
      %v731 = vpop.permute.xlu0 %730
      %v732 = vsel %vm465, %v727, %v729
      %v733 = vsel %vm465, %v729, %v731
      %736 = vst [vmem:[#allocation3 + $0x70] sm:$0xf] %v732
      %737 = vst [vmem:[#allocation3 + $0x78] sm:$0xf] %v733
      %v738 = vld [vmem:[#allocation2 + $0x4] sm:$0xff]
      %v739 = vld [vmem:[#allocation2 + $0xc] sm:$0xf]
      %v742 = vcombine.high %v738, %v738
      %743 = vrot.lane.b32.xlu0 %v738, 111
      %v744 = vpop.permute.xlu0 %743
      %745 = vrot.lane.b32.xlu0 %v742, 111
      %v746 = vpop.permute.xlu0 %745
      %747 = vrot.lane.b32.xlu0 %v739, 111
      %v748 = vpop.permute.xlu0 %747
      %v749 = vsel %vm483, %v744, %v746
      %v750 = vsel %vm483, %v746, %v748
      %v753 = vsel %vm368, %v749, 0.0
      %v754 = vsel %vm369, %v750, 0.0
      %755 = vst [vmem:[#allocation3 + $0x80] sm:$0xf] %v753
      %756 = vst [vmem:[#allocation3 + $0x88] sm:$0xf] %v754
      %v757 = vld [vmem:[%s3] sm:$0xff]
      %v758 = vld [vmem:[%s3 + $0x8] sm:$0xff]
      %v759 = vld [vmem:[%s3 + $0x10] sm:$0xff]
      %v760 = vld [vmem:[%s3 + $0x18] sm:$0xff]
      %v761 = vld [vmem:[#allocation3] sm:$0xff]
      %v762 = vld [vmem:[#allocation3 + $0x8] sm:$0xff]
      %v763 = vld [vmem:[#allocation3 + $0x10] sm:$0xff]
      %v764 = vld [vmem:[#allocation3 + $0x18] sm:$0xff]
      %v765 = vld [vmem:[#allocation3 + $0x20] sm:$0xff]
      %v766 = vld [vmem:[#allocation3 + $0x28] sm:$0xff]
      %v767 = vld [vmem:[#allocation3 + $0x30] sm:$0xff]
      %v768 = vld [vmem:[#allocation3 + $0x38] sm:$0xff]
      %v769 = vld [vmem:[#allocation3 + $0x40] sm:$0xff]
      %v770 = vld [vmem:[#allocation3 + $0x48] sm:$0xff]
      %v771 = vld [vmem:[#allocation3 + $0x50] sm:$0xff]
      %v772 = vld [vmem:[#allocation3 + $0x58] sm:$0xff]
      %v773 = vld [vmem:[#allocation3 + $0x60] sm:$0xff]
      %v774 = vld [vmem:[#allocation3 + $0x68] sm:$0xff]
      %v775 = vld [vmem:[#allocation3 + $0x70] sm:$0xff]
      %v776 = vld [vmem:[#allocation3 + $0x78] sm:$0xff]
      %v777 = vld [vmem:[#allocation3 + $0x80] sm:$0xff]
      %v778 = vld [vmem:[#allocation3 + $0x88] sm:$0xff]
      %v779 = vld [vmem:[%s4] sm:$0xff]
      %v780 = vld [vmem:[%s4 + $0x8] sm:$0xff]
      %v781 = vld [vmem:[%s4 + $0x10] sm:$0xff]
      %v782 = vld [vmem:[%s4 + $0x18] sm:$0xff]
      %784 = vset.pattern.permute.xlu0 0
      %785 = vperm.xlu0 %784, %v779
      %v786 = vpop.permute.xlu0 %785
      %789 = vset.pattern.permute.xlu0 0
      %790 = vperm.xlu0 %789, %v780
      %v791 = vpop.permute.xlu0 %790
      %794 = vset.pattern.permute.xlu0 0
      %795 = vperm.xlu0 %794, %v781
      %v796 = vpop.permute.xlu0 %795
      %799 = vset.pattern.permute.xlu0 0
      %800 = vperm.xlu0 %799, %v782
      %v801 = vpop.permute.xlu0 %800
      %v804 = vsel %vm517, %v757, 0
      %v807 = vsel %vm517, %v758, 0
      %v810 = vsel %vm517, %v759, 0
      %v813 = vsel %vm517, %v760, 0
      %815 = vmatprep.subr.mxu0 %v762
      %816 = vmatpush1.msra.mxu0 %v761
      %817 = vmatprep.subr.mxu0 %v764
      %818 = vmatpush1.msra.mxu0 %v763
      %819 = vmatprep.subr.mxu0 %v766
      %820 = vmatpush1.msra.mxu0 %v765
      %821 = vmatprep.subr.mxu0 %v768
      %822 = vmatpush1.msra.mxu0 %v767
      %823 = vmatprep.subr.mxu0 %v770
      %824 = vmatpush1.msra.mxu0 %v769
      %825 = vmatprep.subr.mxu0 %v772
      %826 = vmatpush1.msra.mxu0 %v771
      %827 = vmatprep.subr.mxu0 %v774
      %828 = vmatpush1.msra.mxu0 %v773
      %829 = vmatprep.subr.mxu0 %v776
      %830 = vmatpush1.msra.mxu0 %v775
      %831 = vmatprep.subr.mxu0 %v778
      %832 = vmatpush1.msra.mxu0 %v777
      %833 = vmatprep.subr.mxu0 0.0
      %834 = vmatpush1.msra.mxu0 0.0
      %835 = vmatprep.subr.mxu0 0.0
      %836 = vmatpush1.msra.mxu0 0.0
      %837 = vmatprep.subr.mxu0 0.0
      %838 = vmatpush1.msra.mxu0 0.0
      %839 = vmatprep.subr.mxu0 0.0
      %840 = vmatpush1.msra.mxu0 0.0
      %841 = vmatprep.subr.mxu0 0.0
      %842 = vmatpush1.msra.mxu0 0.0
      %843 = vmatprep.subr.mxu0 0.0
      %844 = vmatpush1.msra.mxu0 0.0
      %845 = vmatprep.subr.mxu0 0.0
      %846 = vmatpush1.msra.mxu0 0.0
      %847 = vmatprep.subr.mxu0 0.0
      %848 = vmatpush1.msra.mxu0 0.0
      %849 = vmatprep.subr.mxu0 0.0
      %850 = vmatpush1.msra.mxu0 0.0
      %851 = vmatprep.subr.mxu0 0.0
      %852 = vmatpush1.msra.mxu0 0.0
      %853 = vmatprep.subr.mxu0 0.0
      %854 = vmatpush1.msra.mxu0 0.0
      %855 = vmatprep.subr.mxu0 0.0
      %856 = vmatpush1.msra.mxu0 0.0
      %857 = vmatprep.subr.mxu0 0.0
      %858 = vmatpush1.msra.mxu0 0.0
      %859 = vmatprep.subr.mxu0 0.0
      %860 = vmatpush1.msra.mxu0 0.0
      %861 = vmatprep.subr.mxu0 0.0
      %862 = vmatpush1.msra.mxu0 0.0
      %863 = vmatprep.subr.mxu0 0.0
      %864 = vmatpush1.msra.mxu0 0.0
      %865 = vmatprep.subr.mxu0 0.0
      %866 = vmatpush1.msra.mxu0 0.0
      %867 = vmatprep.subr.mxu0 0.0
      %868 = vmatpush1.msra.mxu0 0.0
      %869 = vmatprep.subr.mxu0 0.0
      %870 = vmatpush1.msra.mxu0 0.0
      %871 = vmatprep.subr.mxu0 0.0
      %872 = vmatpush1.msra.mxu0 0.0
      %873 = vmatprep.subr.mxu0 0.0
      %874 = vmatpush1.msra.mxu0 0.0
      %875 = vmatprep.subr.mxu0 0.0
      %876 = vmatpush1.msra.mxu0 0.0
      %877 = vmatprep.subr.mxu0 0.0
      %878 = vmatpush1.msra.mxu0 0.0
      %879 = vmatprep.mubr.f32.mxu0 0.0
      %880 = vmatmul.mubr.f32.gmra.mrb[0].mxu0 %v804
      %v881 = vpop.f32.mrb[0].mxu0
      %v882 = vadd.f32 %v786, %v881
      %v883 = vpop.f32.mrb[0].mxu0
      %v884 = vadd.f32 %v786, %v883
      %885 = vmatprep.mubr.f32.mxu0 0.0
      %886 = vmatmul.mubr.f32.gmra.mrb[0].mxu0 %v807
      %v887 = vpop.f32.mrb[0].mxu0
      %v888 = vadd.f32 %v791, %v887
      %v889 = vpop.f32.mrb[0].mxu0
      %v890 = vadd.f32 %v791, %v889
      %891 = vmatprep.mubr.f32.mxu0 0.0
      %892 = vmatmul.mubr.f32.gmra.mrb[0].mxu0 %v810
      %v893 = vpop.f32.mrb[0].mxu0
      %v894 = vadd.f32 %v796, %v893
      %v895 = vpop.f32.mrb[0].mxu0
      %v896 = vadd.f32 %v796, %v895
      %897 = vmatprep.mubr.f32.mxu0 0.0
      %898 = vmatmul.mubr.f32.gmra.mrb[0].mxu0 %v813
      %v899 = vpop.f32.mrb[0].mxu0
      %v900 = vadd.f32 %v801, %v899
      %v901 = vpop.f32.mrb[0].mxu0
      %v902 = vadd.f32 %v801, %v901
      %903 = vdwg.mxu0
      %vm904 = vcmp.ge.f32.partialorder %v882, 0.0
      %vm905 = vcmp.ge.f32.partialorder %v884, 0.0
      %vm906 = vcmp.ge.f32.partialorder %v888, 0.0
      %vm907 = vcmp.ge.f32.partialorder %v890, 0.0
      %vm908 = vcmp.ge.f32.partialorder %v894, 0.0
      %vm909 = vcmp.ge.f32.partialorder %v896, 0.0
      %vm910 = vcmp.ge.f32.partialorder %v900, 0.0
      %vm911 = vcmp.ge.f32.partialorder %v902, 0.0
      %v912 = vmul.f32 %v882, 0.01
      %v913 = vmul.f32 %v884, 0.01
      %v914 = vmul.f32 %v888, 0.01
      %v915 = vmul.f32 %v890, 0.01
      %v916 = vmul.f32 %v894, 0.01
      %v917 = vmul.f32 %v896, 0.01
      %v918 = vmul.f32 %v900, 0.01
      %v919 = vmul.f32 %v902, 0.01
      %v920 = vsel %vm904, %v882, %v912
      %v921 = vsel %vm905, %v884, %v913
      %v922 = vsel %vm906, %v888, %v914
      %v923 = vsel %vm907, %v890, %v915
      %v924 = vsel %vm908, %v894, %v916
      %v925 = vsel %vm909, %v896, %v917
      %v926 = vsel %vm910, %v900, %v918
      %v927 = vsel %vm911, %v902, %v919
      %v928 = vld [vmem:[%s263] sm:$0x3]
      %v930 = vlaneseq
      %v931 = vshrl.u32 %v930, 7
      %v932 = vsub.s32 0, %v931
      %v933 = vrot.slane %v928, %v932
      %v934 = vlaneseq
      %v935 = vshrl.u32 %v934, 7
      %v936 = vsub.s32 1, %v935
      %v937 = vrot.slane %v928, %v936
      %v940 = vmul.f32 %v920, %v933
      %v941 = vmul.f32 %v921, %v937
      %v942 = vmul.f32 %v922, %v933
      %v943 = vmul.f32 %v923, %v937
      %v944 = vmul.f32 %v924, %v933
      %v945 = vmul.f32 %v925, %v937
      %v946 = vmul.f32 %v926, %v933
      %v947 = vmul.f32 %v927, %v937
      %948 = vst [vmem:[%s268] sm:$0xff] %v940
      %949 = vst [vmem:[%s268 + $0x8] sm:$0xff] %v941
      %950 = vst [vmem:[%s268 + $0x10] sm:$0xff] %v942
      %951 = vst [vmem:[%s268 + $0x18] sm:$0xff] %v943
      %952 = vst [vmem:[%s268 + $0x20] sm:$0xff] %v944
      %953 = vst [vmem:[%s268 + $0x28] sm:$0xff] %v945
      %954 = vst [vmem:[%s268 + $0x30] sm:$0xff] %v946
      %955 = vst [vmem:[%s268 + $0x38] sm:$0xff] %v947
      %p956 = scmp.lt.s32.totalorder %s17, 1
      %s957 = scalar_select %p956, %s17, 1
      %s958 = smul.addr %s957, 8
      %s959 = smul.addr %s958, 8
      %s960 = scalar_lea.vmem %s6, %s959
      // Predicated region
      $region45: #{depth_map_cnn_forward.1} parent=43 // pred_check
        %p961 = pneg %p171
      $region46: #{depth_map_cnn_forward.1} parent=43 // pred_check_branch
        %963 = sbr.rel (%p961) target = $region48
      $region47: #{depth_map_cnn_forward.1} parent=43 // pred_region
        _
      $region48: #{depth_map_cnn_forward.1} parent=43 // pred_fallthru
        _
    $region44: #{depth_map_cnn_forward.1} parent=5 // pred_fallthru
      _
    %p964 = scmp.le.s32.totalorder 2, %s12
    // Predicated region
    $region49: #{depth_map_cnn_forward.1} parent=5 // pred_check
      %p965 = pneg %p964
    $region50: #{depth_map_cnn_forward.1} parent=5 // pred_check_branch
      %967 = sbr.rel (%p965) target = $region52
    $region51: #{depth_map_cnn_forward.1} parent=5 // pred_region
      %s968 = ssub.s32 %s12, 2
      // Predicated region
      $region53: #{depth_map_cnn_forward.1} parent=51 // pred_check
        %p969 = pneg %p177
      $region54: #{depth_map_cnn_forward.1} parent=51 // pred_check_branch
        %971 = sbr.rel (%p969) target = $region56
      $region55: #{depth_map_cnn_forward.1} parent=51 // pred_region
        %p972 = scmp.lt.s32.totalorder %s18, 1
        %s973 = scalar_select %p972, %s18, 1
        %s974 = smul.addr %s973, 8
        %s975 = smul.addr %s974, 8
        %s976 = scalar_lea.vmem %s6, %s975
      $region56: #{depth_map_cnn_forward.1} parent=51 // pred_fallthru
        _
    $region52: #{depth_map_cnn_forward.1} parent=5 // pred_fallthru
      _
  $region6: #{depth_map_cnn_forward.1} parent=0 // loop_footer
    %s16 = sadd.s32 1, %s12
  $region7: #{depth_map_cnn_forward.1} parent=0 // loop_footer_branch
    %11 = sbr.rel target = $region3
  $region8: #{depth_map_cnn_forward.1} parent=0 // loop_exit
    _

</llo_original>
